<compile_context>
chip_gen: v7x
topology: tpu7x:2x2x1
jax: 0.10.0
libtpu: 0.0.40
codegen_flags: <defaults>
</compile_context>

<pallas_src>
import jax
import jax.numpy as jnp
from jax.experimental import pallas as pl
from jax.experimental.pallas import tpu as pltpu


def _gbn_kernel(eps, gpb, elems_per_group):
    """gpb groups per grid step; elems_per_group = Cpg * H * W."""
    n = float(elems_per_group)
    inv_nm1 = 1.0 / (n - 1.0)

    def kernel(x_ref, gamma_ref, beta_ref, o_ref):
        # x_ref: (1, gpb, R, L) — R = Cpg*f rows (channel-major), L = HW/f lanes.
        x = x_ref[0].astype(jnp.float32)                       # (gpb, R, L)

        # Two-pass per-group stats (data already resident in VMEM, so the
        # second pass is hidden under the HBM-bound roofline).
        s = jnp.sum(jnp.sum(x, axis=2, keepdims=True), axis=1, keepdims=True)
        mean = s / n                                           # (gpb, 1, 1)
        d = x - mean
        ss = jnp.sum(jnp.sum(d * d, axis=2, keepdims=True), axis=1, keepdims=True)
        var = jnp.maximum(ss * inv_nm1, 0.0)                   # unbiased, clamped
        std = jnp.sqrt(var)
        # eps added to std (not var) to match the PyTorch module exactly.
        # One exact divide per group (gpb scalars per step) — negligible.
        inv = 1.0 / (std + eps)                                # (gpb, 1, 1)

        # gamma/beta live once in VMEM as the full (G, R, 1) arrays; slice the
        # rows for this step's groups (no per-step parameter DMA).
        g0 = pl.multiple_of(pl.program_id(1) * gpb, gpb)
        gamma = gamma_ref[pl.ds(g0, gpb)]                      # (gpb, R, 1)
        beta = beta_ref[pl.ds(g0, gpb)]                        # (gpb, R, 1)

        # Fused normalize + affine: y = x*a + b with per-row a, b broadcast
        # over the lane axis.
        a = gamma * inv                                        # (gpb, R, 1)
        b = beta - mean * a                                    # (gpb, R, 1)
        o_ref[0] = (x * a + b).astype(o_ref.dtype)

    return kernel


def _pick_fold(cpg, hw):
    """Fold factor f: HW -> (f rows, HW/f lanes) with HW/f a multiple of 128,
    aiming for cpg*f >= 8 full f32 sublanes.  f = 1 if HW isn't 128-divisible."""
    if hw % 128 != 0:
        return 1
    k = hw // 128
    best = 1
    for f in range(1, k + 1):
        if k % f:                      # need (HW // f) % 128 == 0  <=>  f | k
            continue
        best = f
        if cpg * f >= 8:
            break
    return best


def _pick_groups_per_block(n_batch, g, group_io_bytes, group_f32_bytes, vmem_budget):
    """Largest divisor of G whose tile fits the VMEM budget, preferring choices
    that leave >= 2 grid steps (pipelining; v7x has 2 TensorCores)."""
    divisors = [d for d in range(1, g + 1) if g % d == 0]

    def fits(d):
        # double-buffered in + out at input dtype, plus ~3x f32 working set.
        need = 4 * d * group_io_bytes + 3 * d * group_f32_bytes + (256 << 10)
        return need <= vmem_budget

    fitting = [d for d in divisors if fits(d)]
    if not fitting:
        # TODO(synk): when even one group tile exceeds the budget, split HW
        # along an "arbitrary" grid axis (stats pass + apply pass).
        return 1
    multi_step = [d for d in fitting if n_batch * (g // d) >= 2]
    return max(multi_step) if multi_step else max(fitting)


def group_batchnorm2d(x, gamma, beta, group_num=16, eps=1e-10):
    """x: (N, C, H, W); gamma/beta: (C, 1, 1). Returns (N, C, H, W)."""
    N, C, H, W = x.shape
    G = group_num
    assert C >= G and C % G == 0
    Cpg = C // G
    HW = H * W
    assert Cpg * HW > 1, "unbiased std needs more than one element per group"

    itemsize = jnp.dtype(x.dtype).itemsize

    # ---- Layout: fold spatial rows into the sublane axis when it helps ----
    f = _pick_fold(Cpg, HW)
    R = Cpg * f            # rows per group (channel-major; sublane axis)
    L = HW // f            # lanes per row (multiple of 128 when HW allows)
    # TODO(synk): when HW is not a multiple of 128 stores stay masked
    # (vst.msk); a pad-to-128 + masked-stats variant would make them unmasked.

    xg = x.reshape(N, G, R, L)                 # contiguous reshape, no copy
    gamma_g = jnp.repeat(gamma.reshape(G, Cpg, 1).astype(jnp.float32), f, axis=1)
    beta_g = jnp.repeat(beta.reshape(G, Cpg, 1).astype(jnp.float32), f, axis=1)

    # ---- Generation-aware VMEM budget & tile selection ----
    try:
        vmem_cap = int(pltpu.get_tpu_info().vmem_capacity_bytes)
    except Exception:
        vmem_cap = 64 << 20            # v7x per-TC physical size (conservative)
    vmem_budget = int(vmem_cap * 0.80)  # headroom for compiler scratch / params

    group_io = R * L * itemsize         # one group tile at input dtype
    group_f32 = R * L * 4               # f32 working copy inside the kernel
    gpb = _pick_groups_per_block(N, G, group_io, group_f32, vmem_budget)

    block_need = (4 * gpb * group_io + 3 * gpb * group_f32
                  + 4 * G * R * 4 + (1 << 20))
    vmem_limit = int(min(max(block_need + (4 << 20), 32 << 20), vmem_budget))
    if vmem_limit < block_need:
        # TODO(synk): single-group tile exceeds the budget — needs the HW-split
        # two-pass path; request what we need and let the compiler decide.
        vmem_limit = int(block_need)

    grid = (N, G // gpb)

    out = pl.pallas_call(
        _gbn_kernel(eps, gpb, Cpg * HW),
        out_shape=jax.ShapeDtypeStruct((N, G, R, L), x.dtype),
        grid_spec=pltpu.PrefetchScalarGridSpec(
            num_scalar_prefetch=0,
            grid=grid,
            in_specs=[
                pl.BlockSpec((1, gpb, R, L), lambda n, g: (n, g, 0, 0)),
                # gamma/beta: whole (tiny) arrays with a CONSTANT block index
                # -> one-time DMA; sliced per grid step inside the kernel.
                pl.BlockSpec((G, R, 1), lambda n, g: (0, 0, 0)),
                pl.BlockSpec((G, R, 1), lambda n, g: (0, 0, 0)),
            ],
            out_specs=pl.BlockSpec((1, gpb, R, L), lambda n, g: (n, g, 0, 0)),
        ),
        compiler_params=pltpu.CompilerParams(
            dimension_semantics=("parallel", "parallel"),
            vmem_limit_bytes=vmem_limit),
    )(xg, gamma_g, beta_g)

    return out.reshape(N, C, H, W)


def _reference(x, gamma, beta, group_num, eps):
    N, C, H, W = x.shape
    xg = x.reshape(N, group_num, -1).astype(jnp.float32)
    mean = jnp.mean(xg, axis=2, keepdims=True)
    n = xg.shape[2]
    var = jnp.sum((xg - mean) ** 2, axis=2, keepdims=True) / (n - 1)
    std = jnp.sqrt(var)
    xn = ((xg - mean) / (std + eps)).reshape(N, C, H, W)
    return xn * gamma[None] + beta[None]


if __name__ == "__main__":
    key = jax.random.PRNGKey(0)
    k_x, k_g = jax.random.split(key)

    N, C, H, W = 2, 4, 16, 16
    group_num = 2          # c_num >= group_num
    eps = 1e-10

    x = jax.random.normal(k_x, (N, C, H, W), dtype=jnp.float32)
    gamma = jax.random.normal(k_g, (C, 1, 1), dtype=jnp.float32)  # randn init
    beta = jnp.zeros((C, 1, 1), dtype=jnp.float32)                # zeros init

    y = group_batchnorm2d(x, gamma, beta, group_num=group_num, eps=eps)
    y = jax.block_until_ready(y)

    y_ref = _reference(x, gamma, beta, group_num, eps)
    assert y.shape == (N, C, H, W)
    assert jnp.allclose(y, y_ref, atol=1e-4, rtol=1e-4)

    print("KERNEL_OK")
</pallas_src>

<mosaic_0001>
module attributes {stable_mosaic.version = 11 : i64} {
  func.func @kernel(%arg0: i32, %arg1: i32, %arg2: memref<1x2x4x128xf32, #tpu.memory_space<vmem>>, %arg3: memref<2x4x1xf32, #tpu.memory_space<vmem>>, %arg4: memref<2x4x1xf32, #tpu.memory_space<vmem>>, %arg5: memref<1x2x4x128xf32, #tpu.memory_space<vmem>>) attributes {dimension_semantics = [#tpu.dimension_semantics<parallel>, #tpu.dimension_semantics<parallel>], iteration_bounds = array<i64: 2, 1>, scalar_prefetch = 0 : i64, scratch_operands = 0 : i64, tpu.core_type = #tpu.core_type<tc>, window_params = [{transform_indices = @transform_0, window_bounds = array<i64: 1, 2, 4, 128>}, {pipeline_mode = #tpu.pipeline_mode<synchronous>, transform_indices = @transform_1, window_bounds = array<i64: 2, 4, 1>}, {pipeline_mode = #tpu.pipeline_mode<synchronous>, transform_indices = @transform_2, window_bounds = array<i64: 2, 4, 1>}, {transform_indices = @transform_3, window_bounds = array<i64: 1, 2, 4, 128>}]} {
    %c0 = arith.constant 0 : index
    %c0_0 = arith.constant 0 : index
    %c0_1 = arith.constant 0 : index
    %c0_2 = arith.constant 0 : index
    %0 = vector.load %arg2[%c0, %c0_0, %c0_1, %c0_2] : memref<1x2x4x128xf32, #tpu.memory_space<vmem>>, vector<1x2x4x128xf32>
    %1 = vector.shape_cast %0 : vector<1x2x4x128xf32> to vector<2x4x128xf32>
    %cst = arith.constant dense<0.000000e+00> : vector<2x4xf32>
    %2 = vector.multi_reduction <add>, %1, %cst [2] : vector<2x4x128xf32> to vector<2x4xf32>
    %3 = vector.shape_cast %2 : vector<2x4xf32> to vector<2x4x1xf32>
    %cst_3 = arith.constant dense<0.000000e+00> : vector<2x1xf32>
    %4 = vector.multi_reduction <add>, %3, %cst_3 [1] : vector<2x4x1xf32> to vector<2x1xf32>
    %5 = vector.shape_cast %4 : vector<2x1xf32> to vector<2x1x1xf32>
    %cst_4 = arith.constant 5.120000e+02 : f32
    %6 = vector.broadcast %cst_4 : f32 to vector<2x1x1xf32>
    %7 = arith.divf %5, %6 : vector<2x1x1xf32>
    %8 = vector.broadcast %7 : vector<2x1x1xf32> to vector<2x4x128xf32>
    %9 = arith.subf %1, %8 : vector<2x4x128xf32>
    %10 = arith.mulf %9, %9 : vector<2x4x128xf32>
    %cst_5 = arith.constant dense<0.000000e+00> : vector<2x4xf32>
    %11 = vector.multi_reduction <add>, %10, %cst_5 [2] : vector<2x4x128xf32> to vector<2x4xf32>
    %12 = vector.shape_cast %11 : vector<2x4xf32> to vector<2x4x1xf32>
    %cst_6 = arith.constant dense<0.000000e+00> : vector<2x1xf32>
    %13 = vector.multi_reduction <add>, %12, %cst_6 [1] : vector<2x4x1xf32> to vector<2x1xf32>
    %14 = vector.shape_cast %13 : vector<2x1xf32> to vector<2x1x1xf32>
    %cst_7 = arith.constant 0.00195694715 : f32
    %15 = vector.broadcast %cst_7 : f32 to vector<2x1x1xf32>
    %16 = arith.mulf %14, %15 : vector<2x1x1xf32>
    %cst_8 = arith.constant 0.000000e+00 : f32
    %17 = vector.broadcast %cst_8 : f32 to vector<2x1x1xf32>
    %18 = arith.maximumf %16, %17 : vector<2x1x1xf32>
    %19 = math.sqrt %18 : vector<2x1x1xf32>
    %cst_9 = arith.constant 1.000000e-10 : f32
    %20 = vector.broadcast %cst_9 : f32 to vector<2x1x1xf32>
    %21 = arith.addf %19, %20 : vector<2x1x1xf32>
    %cst_10 = arith.constant 1.000000e+00 : f32
    %22 = vector.broadcast %cst_10 : f32 to vector<2x1x1xf32>
    %23 = arith.divf %22, %21 : vector<2x1x1xf32>
    %c2_i32 = arith.constant 2 : i32
    %24 = arith.muli %arg1, %c2_i32 : i32
    %25 = tpu.assume_multiple %24, 2 : i32
    %26 = arith.index_cast %25 : i32 to index
    %c0_11 = arith.constant 0 : index
    %c0_12 = arith.constant 0 : index
    %27 = vector.load %arg3[%26, %c0_11, %c0_12] : memref<2x4x1xf32, #tpu.memory_space<vmem>>, vector<2x4x1xf32>
    %28 = arith.index_cast %25 : i32 to index
    %c0_13 = arith.constant 0 : index
    %c0_14 = arith.constant 0 : index
    %29 = vector.load %arg4[%28, %c0_13, %c0_14] : memref<2x4x1xf32, #tpu.memory_space<vmem>>, vector<2x4x1xf32>
    %30 = vector.broadcast %23 : vector<2x1x1xf32> to vector<2x4x1xf32>
    %31 = arith.mulf %27, %30 : vector<2x4x1xf32>
    %32 = vector.broadcast %7 : vector<2x1x1xf32> to vector<2x4x1xf32>
    %33 = arith.mulf %32, %31 : vector<2x4x1xf32>
    %34 = arith.subf %29, %33 : vector<2x4x1xf32>
    %35 = vector.broadcast %31 : vector<2x4x1xf32> to vector<2x4x128xf32>
    %36 = arith.mulf %1, %35 : vector<2x4x128xf32>
    %37 = vector.broadcast %34 : vector<2x4x1xf32> to vector<2x4x128xf32>
    %38 = arith.addf %36, %37 : vector<2x4x128xf32>
    %c0_15 = arith.constant 0 : index
    %c0_16 = arith.constant 0 : index
    %c0_17 = arith.constant 0 : index
    %c0_18 = arith.constant 0 : index
    %39 = vector.load %arg5[%c0_15, %c0_16, %c0_17, %c0_18] : memref<1x2x4x128xf32, #tpu.memory_space<vmem>>, vector<1x2x4x128xf32>
    %40 = vector.shape_cast %39 : vector<1x2x4x128xf32> to vector<2x4x128xf32>
    %41 = vector.shape_cast %38 : vector<2x4x128xf32> to vector<1x2x4x128xf32>
    tpu.vector_store %arg5[%c0_15, %c0_16, %c0_17, %c0_18], %41 {strides = array<i32>} : memref<1x2x4x128xf32, #tpu.memory_space<vmem>>, vector<1x2x4x128xf32>,
    return
  }
  func.func @transform_0(%arg0: i32, %arg1: i32) -> (i32, i32, i32, i32) {
    %c0_i32 = arith.constant 0 : i32
    %c0_i32_0 = arith.constant 0 : i32
    %c0_i32_1 = arith.constant 0 : i32
    return %arg0, %arg1, %c0_i32, %c0_i32_0 : i32, i32, i32, i32
  }
  func.func @transform_1(%arg0: i32, %arg1: i32) -> (i32, i32, i32) {
    %c0_i32 = arith.constant 0 : i32
    %c0_i32_0 = arith.constant 0 : i32
    %c0_i32_1 = arith.constant 0 : i32
    %c0_i32_2 = arith.constant 0 : i32
    return %c0_i32, %c0_i32_0, %c0_i32_1 : i32, i32, i32
  }
  func.func @transform_2(%arg0: i32, %arg1: i32) -> (i32, i32, i32) {
    %c0_i32 = arith.constant 0 : i32
    %c0_i32_0 = arith.constant 0 : i32
    %c0_i32_1 = arith.constant 0 : i32
    %c0_i32_2 = arith.constant 0 : i32
    return %c0_i32, %c0_i32_0, %c0_i32_1 : i32, i32, i32
  }
  func.func @transform_3(%arg0: i32, %arg1: i32) -> (i32, i32, i32, i32) {
    %c0_i32 = arith.constant 0 : i32
    %c0_i32_0 = arith.constant 0 : i32
    %c0_i32_1 = arith.constant 0 : i32
    return %arg0, %arg1, %c0_i32, %c0_i32_0 : i32, i32, i32, i32
  }
}

</mosaic_0001>

<llo_original>
// kernel: tpu_custom_call.1
$region0: #{tpu_custom_call.1}
  #allocation0 [shape = 'u32[]', space=smem, size = 0x4, offset = 0x4, fixed_abs, tag = 'smem constant byte address 0x4 - core index']
  #allocation1 [shape = 'u32[144,128]{1,0:T(1,128)}', space=vmem, size = 0x12000, scoped, tag = 'internal scratch']
  %s0 = inlined_call_operand.vmem [shape: f32[2,2,4,128], index: 0, kind: input, shape index: {}]
  %s1 = inlined_call_operand.vmem [shape: f32[2,4,1], index: 1, kind: input, shape index: {}]
  %s2 = inlined_call_operand.vmem [shape: f32[2,4,1], index: 2, kind: input, shape index: {}]
  %s3 = inlined_call_operand.hbm [shape: f32[2,2,4,128], index: 3, kind: output, shape index: {}]
  %s4 = sld [smem:[#allocation0]]
  $region45: #{tpu_custom_call.1} parent=0
    _
  %s6 = ssub.s32 1, %s4
  %s7 = scalar_select 0, %s6, %s4
  $region1: #{tpu_custom_call.1} parent=0
    #allocation2 [shape = 'u8[8192]{0}', space=vmem, size = 0x2000, scoped, tag = 'output window, operand 0']
    #allocation3 [shape = 's32[2]{0}', space=sflag, size = 0x8, scoped, tag = 'scoped memory for tpu_custom_call.1']
    %8 = vsyncpa [#allocation3], 0
    %s9 = scalar_lea.sflag [#allocation3], 1
    %10 = vsyncpa %s9, 0
    loop: start=0, step=1, limit=4
    $region2: #{tpu_custom_call.1} parent=1 // loop_pre_header
      _
    $region3: #{tpu_custom_call.1} parent=1 // loop_header
      %s12 = sphi 0, %s16
      %p13 = scmp.ge.s32.totalorder %s12, 4
      %s19 = sphi 0, %s31
      %s20 = sphi 0, %s27
      %s21 = sphi 0, %s19
      %s22 = sphi 0, %s20
      %s23 = sphi 0, %s21
      %s24 = sphi 0, %s22
      %s36 = sphi 0, %s38
      %s39 = sphi 0, %s36
      %s40 = sphi 0, %s39
      %s56 = sphi 0, %s40
      %s60 = sphi 0, %s60
      %s62 = sphi 0, %s60
      %s63 = sphi 0, %s62
      %s77 = sphi 0, %s63
      %s81 = sphi 0, %s81
      %s83 = sphi 0, %s81
      %s84 = sphi 0, %s83
      %s98 = sphi 0, %s84
      %s106 = sphi 0, %s108
      %s109 = sphi 0, %s106
      %s110 = sphi 0, %s109
      %s126 = sphi 0, %s110
    $region4: #{tpu_custom_call.1} parent=1 // loop_header_branch
      %15 = sbr.rel (%p13) target = $region8
    $region5: #{tpu_custom_call.1} parent=1 // loop_body
      %s17 = ssub.s32 %s12, 1
      %s18 = ssub.s32 %s12, 2
      %s25 = sadd.s32 1, %s20
      %p26 = scmp.ge.s32.totalorder %s25, 1
      %s27 = scalar_select %p26, 0, %s25
      %s28 = sadd.s32 1, %s19
      %s29 = scalar_select %p26, %s28, %s19
      %p30 = scmp.ge.s32.totalorder %s29, 2
      %s31 = scalar_select %p30, 0, %s29
      %s32 = ssub.s32 %s19, %s31
      %s33 = ssub.s32 %s20, %s27
      %s34 = sor.u32 %s32, %s33
      %p35 = scmp.eq.s32.totalorder %s34, 0
      %s37 = sadd.s32 %s36, 1
      %s38 = scalar_select %p35, %s36, %s37
      %p41 = pneg %p35
      %p42 = scmp.eq.s32.totalorder %s12, 1
      %p43 = por %p41, %p42
      %p44 = scmp.ne.s32.totalorder %s36, %s39
      %p45 = scmp.eq.s32.totalorder %s12, 0
      %p46 = por %p44, %p45
      %p47 = scmp.ne.s32.totalorder %s36, %s39
      %p48 = scmp.eq.s32.totalorder %s17, 1
      %p49 = por %p47, %p48
      %p50 = scmp.ne.s32.totalorder %s39, %s40
      %p51 = scmp.eq.s32.totalorder %s17, 0
      %p52 = por %p50, %p51
      %p53 = scmp.ne.s32.totalorder %s39, %s40
      %p54 = scmp.eq.s32.totalorder %s18, 1
      %p55 = por %p53, %p54
      %p57 = scmp.ne.s32.totalorder %s40, %s56
      %p58 = scmp.eq.s32.totalorder %s18, 0
      %p59 = por %p57, %p58
      %s61 = sadd.s32 %s60, 1
      %p64 = scmp.eq.s32.totalorder %s12, 1
      %p65 = scmp.ne.s32.totalorder %s60, %s62
      %p66 = scmp.eq.s32.totalorder %s12, 0
      %p67 = por %p65, %p66
      %p68 = scmp.ne.s32.totalorder %s60, %s62
      %p69 = scmp.eq.s32.totalorder %s17, 1
      %p70 = por %p68, %p69
      %p71 = scmp.ne.s32.totalorder %s62, %s63
      %p72 = scmp.eq.s32.totalorder %s17, 0
      %p73 = por %p71, %p72
      %p74 = scmp.ne.s32.totalorder %s62, %s63
      %p75 = scmp.eq.s32.totalorder %s18, 1
      %p76 = por %p74, %p75
      %p78 = scmp.ne.s32.totalorder %s63, %s77
      %p79 = scmp.eq.s32.totalorder %s18, 0
      %p80 = por %p78, %p79
      %s82 = sadd.s32 %s81, 1
      %p85 = scmp.eq.s32.totalorder %s12, 1
      %p86 = scmp.ne.s32.totalorder %s81, %s83
      %p87 = scmp.eq.s32.totalorder %s12, 0
      %p88 = por %p86, %p87
      %p89 = scmp.ne.s32.totalorder %s81, %s83
      %p90 = scmp.eq.s32.totalorder %s17, 1
      %p91 = por %p89, %p90
      %p92 = scmp.ne.s32.totalorder %s83, %s84
      %p93 = scmp.eq.s32.totalorder %s17, 0
      %p94 = por %p92, %p93
      %p95 = scmp.ne.s32.totalorder %s83, %s84
      %p96 = scmp.eq.s32.totalorder %s18, 1
      %p97 = por %p95, %p96
      %p99 = scmp.ne.s32.totalorder %s84, %s98
      %p100 = scmp.eq.s32.totalorder %s18, 0
      %p101 = por %p99, %p100
      %s102 = ssub.s32 %s19, %s31
      %s103 = ssub.s32 %s20, %s27
      %s104 = sor.u32 %s102, %s103
      %p105 = scmp.eq.s32.totalorder %s104, 0
      %s107 = sadd.s32 %s106, 1
      %s108 = scalar_select %p105, %s106, %s107
      %p111 = pneg %p105
      %p112 = scmp.eq.s32.totalorder %s12, 1
      %p113 = por %p111, %p112
      %p114 = scmp.ne.s32.totalorder %s106, %s109
      %p115 = scmp.eq.s32.totalorder %s12, 0
      %p116 = por %p114, %p115
      %p117 = scmp.ne.s32.totalorder %s106, %s109
      %p118 = scmp.eq.s32.totalorder %s17, 1
      %p119 = por %p117, %p118
      %p120 = scmp.ne.s32.totalorder %s109, %s110
      %p121 = scmp.eq.s32.totalorder %s17, 0
      %p122 = por %p120, %p121
      %p123 = scmp.ne.s32.totalorder %s109, %s110
      %p124 = scmp.eq.s32.totalorder %s18, 1
      %p125 = por %p123, %p124
      %p127 = scmp.ne.s32.totalorder %s110, %s126
      %p128 = scmp.eq.s32.totalorder %s18, 0
      %p129 = por %p127, %p128
      %p130 = scmp.le.s32.totalorder 1, %s12
      %p131 = scmp.lt.s32.totalorder %s12, 3
      %p132 = pnand %p130, %p131
      %p133 = pneg %p132
      // Predicated region
      $region9: #{tpu_custom_call.1} parent=5 // pred_check
        _
      $region10: #{tpu_custom_call.1} parent=5 // pred_check_branch
        %135 = sbr.rel (%p132) target = $region12
      $region11: #{tpu_custom_call.1} parent=5 // pred_region
        %s136 = ssub.s32 %s12, 1
        // Predicated region
        $region13: #{tpu_custom_call.1} parent=11 // pred_check
          %p137 = pneg %p73
        $region14: #{tpu_custom_call.1} parent=11 // pred_check_branch
          %139 = sbr.rel (%p137) target = $region16
        $region15: #{tpu_custom_call.1} parent=11 // pred_region
          _
        $region16: #{tpu_custom_call.1} parent=11 // pred_fallthru
          _
        // Predicated region
        $region17: #{tpu_custom_call.1} parent=11 // pred_check
          %p140 = pneg %p94
        $region18: #{tpu_custom_call.1} parent=11 // pred_check_branch
          %142 = sbr.rel (%p140) target = $region20
        $region19: #{tpu_custom_call.1} parent=11 // pred_region
          _
        $region20: #{tpu_custom_call.1} parent=11 // pred_fallthru
          _
      $region12: #{tpu_custom_call.1} parent=5 // pred_fallthru
        _
      %p143 = scmp.lt.s32.totalorder %s12, 2
      // Predicated region
      $region21: #{tpu_custom_call.1} parent=5 // pred_check
        %p144 = pneg %p143
      $region22: #{tpu_custom_call.1} parent=5 // pred_check_branch
        %146 = sbr.rel (%p144) target = $region24
      $region23: #{tpu_custom_call.1} parent=5 // pred_region
        // Predicated region
        $region25: #{tpu_custom_call.1} parent=23 // pred_check
          %p147 = pneg %p46
        $region26: #{tpu_custom_call.1} parent=23 // pred_check_branch
          %149 = sbr.rel (%p147) target = $region28
        $region27: #{tpu_custom_call.1} parent=23 // pred_region
          %s150 = smul.u32 2, %s20
          %p151 = scmp.lt.s32.totalorder %s19, 1
          %s152 = scalar_select %p151, %s19, 1
          %p153 = scmp.lt.s32.totalorder %s150, 1
          %s154 = scalar_select %p153, %s150, 1
          %s155 = smul.addr %s152, 2
          %s156 = sadd.s32 %s154, %s155
          %s157 = smul.addr %s156, 4
          %s158 = scalar_lea.vmem %s0, %s157
          %s159 = smul.u32 2, %s20
        $region28: #{tpu_custom_call.1} parent=23 // pred_fallthru
          _
      $region24: #{tpu_custom_call.1} parent=5 // pred_fallthru
        _
      %p160 = scmp.le.s32.totalorder 1, %s12
      %p161 = scmp.lt.s32.totalorder %s12, 3
      %p162 = pnand %p160, %p161
      %p163 = pneg %p162
      // Predicated region
      $region29: #{tpu_custom_call.1} parent=5 // pred_check
        _
      $region30: #{tpu_custom_call.1} parent=5 // pred_check_branch
        %165 = sbr.rel (%p162) target = $region32
      $region31: #{tpu_custom_call.1} parent=5 // pred_region
        %s166 = ssub.s32 %s12, 1
        %s167 = smul.u32 2, %s22
        %p168 = scmp.lt.s32.totalorder %s21, 1
        %s169 = scalar_select %p168, %s21, 1
        %p170 = scmp.lt.s32.totalorder %s167, 1
        %s171 = scalar_select %p170, %s167, 1
        %s172 = smul.addr %s169, 2
        %s173 = sadd.s32 %s171, %s172
        %s174 = smul.addr %s173, 4
        %s175 = scalar_lea.vmem %s0, %s174
        %p176 = pneg %p52
        %p177 = pneg %p49
        %p178 = pneg %p73
        %p179 = pneg %p70
        %p180 = pneg %p94
        %p181 = pneg %p91
        %p182 = pneg %p122
        %p183 = pneg %p119
        %s184 = sand.u32 %s109, 1
        %s185 = scalar_lea.sflag [#allocation3], %s184
        %s186 = sand.u32 %s109, 1
        %s187 = smul.addr %s186, 8
        %s188 = scalar_lea.vmem [#allocation2], %s187
        %s189 = smul.u32 2, %s22
        %p190 = scmp.lt.s32.totalorder %s21, 1
        %s191 = scalar_select %p190, %s21, 1
        %p192 = scmp.lt.s32.totalorder %s189, 1
        %s193 = scalar_select %p192, %s189, 1
        %s194 = smul.addr %s191, 2
        %s195 = sadd.s32 %s193, %s194
        %s196 = smul.addr %s195, 4
        %s197 = scalar_lea.vmem %s0, %s196
        %s198 = smul.u32 2, %s22
        %s199 = smul.u32 2, %s22
        %v200 = vld [vmem:[%s197] sm:$0xf]
        %v201 = vld [vmem:[%s197 + $0x4] sm:$0xf]
        %vm202 = vcmask 1043456
        %v203 = vsel %vm202, %v200, 0.0
        %204 = vadd.xlane.f32.xlu0 %v203
        %v205 = vpop.xlane.xlu0 %204
        %v206 = vsel %vm202, %v201, 0.0
        %207 = vadd.xlane.f32.xlu0 %v206
        %v208 = vpop.xlane.xlu0 %207
        %v209 = vsel %vm202, %v205, 0.0
        %v210 = vrot.slane %v209, 4
        %v211 = vadd.f32 %v209, %v210
        %v212 = vrot.slane %v211, 2
        %v213 = vadd.f32 %v211, %v212
        %v214 = vrot.slane %v213, 1
        %v215 = vadd.f32 %v213, %v214
        %v216 = vsel %vm202, %v208, 0.0
        %v217 = vrot.slane %v216, 4
        %v218 = vadd.f32 %v216, %v217
        %v219 = vrot.slane %v218, 2
        %v220 = vadd.f32 %v218, %v219
        %v221 = vrot.slane %v220, 1
        %v222 = vadd.f32 %v220, %v221
        %v223 = vrcp.pop 512.0
        %v224 = vmul.f32 %v215, %v223
        %v225 = vmul.f32 %v222, %v223
        %v226 = vsub.f32 %v200, %v224
        %v227 = vsub.f32 %v201, %v225
        %v228 = vmul.f32 %v226, %v226
        %v229 = vmul.f32 %v227, %v227
        %v230 = vsel %vm202, %v228, 0.0
        %231 = vadd.xlane.f32.xlu0 %v230
        %v232 = vpop.xlane.xlu0 %231
        %v233 = vsel %vm202, %v229, 0.0
        %234 = vadd.xlane.f32.xlu0 %v233
        %v235 = vpop.xlane.xlu0 %234
        %v236 = vsel %vm202, %v232, 0.0
        %v237 = vrot.slane %v236, 4
        %v238 = vadd.f32 %v236, %v237
        %v239 = vrot.slane %v238, 2
        %v240 = vadd.f32 %v238, %v239
        %v241 = vrot.slane %v240, 1
        %v242 = vadd.f32 %v240, %v241
        %v243 = vsel %vm202, %v235, 0.0
        %v244 = vrot.slane %v243, 4
        %v245 = vadd.f32 %v243, %v244
        %v246 = vrot.slane %v245, 2
        %v247 = vadd.f32 %v245, %v246
        %v248 = vrot.slane %v247, 1
        %v249 = vadd.f32 %v247, %v248
        %v250 = vmul.f32 %v242, 0.0019569471
        %v251 = vmul.f32 %v249, 0.0019569471
        %v252 = vmax.f32 %v250, 0.0
        %v253 = vmax.f32 %v251, 0.0
        %v254 = vrsqrt.pop %v252
        %v255 = vmul.f32 %v252, %v254
        %vm256 = vcmp.eq.f32.partialorder %v252, inf
        %v257 = vsel %vm256, %v252, %v255
        %vm258 = vcmp.eq.f32.partialorder %v252, 0.0
        %v259 = vand.u32 %v252, 2147483648
        %v260 = vsel %vm258, %v259, %v257
        %v261 = vrsqrt.pop %v253
        %v262 = vmul.f32 %v253, %v261
        %vm263 = vcmp.eq.f32.partialorder %v253, inf
        %v264 = vsel %vm263, %v253, %v262
        %vm265 = vcmp.eq.f32.partialorder %v253, 0.0
        %v266 = vand.u32 %v253, 2147483648
        %v267 = vsel %vm265, %v266, %v264
        %v268 = vadd.f32 %v260, 1e-10
        %v269 = vadd.f32 %v267, 1e-10
        %v270 = vrcp.pop %v268
        %v271 = vmul.f32 1.0, %v270
        %v272 = vrcp.pop %v269
        %v273 = vmul.f32 1.0, %v272
        %s274 = smul.u32 %s22, 2
        %s275 = smul.u32 %s274, 4
        %s276 = scalar_lea.vmem %s1, %s275
        %v277 = vld [vmem:[%s276] sm:$0xf]
        %v278 = vld [vmem:[%s276 + $0x4] sm:$0xf]
        %s279 = scalar_lea.vmem %s2, %s275
        %v280 = vld [vmem:[%s279] sm:$0xf]
        %v281 = vld [vmem:[%s279 + $0x4] sm:$0xf]
        %v282 = vmul.f32 %v277, %v271
        %v283 = vmul.f32 %v278, %v273
        %v284 = vmul.f32 %v224, %v282
        %v285 = vmul.f32 %v225, %v283
        %v286 = vsub.f32 %v280, %v284
        %v287 = vsub.f32 %v281, %v285
        %289 = vset.pattern.permute.xlu0 0
        %290 = vperm.xlu0 %289, %v282
        %v291 = vpop.permute.xlu0 %290
        %294 = vset.pattern.permute.xlu0 0
        %295 = vperm.xlu0 %294, %v283
        %v296 = vpop.permute.xlu0 %295
        %v298 = vmul.f32 %v200, %v291
        %v299 = vmul.f32 %v201, %v296
        %301 = vset.pattern.permute.xlu0 0
        %302 = vperm.xlu0 %301, %v286
        %v303 = vpop.permute.xlu0 %302
        %306 = vset.pattern.permute.xlu0 0
        %307 = vperm.xlu0 %306, %v287
        %v308 = vpop.permute.xlu0 %307
        %v310 = vadd.f32 %v298, %v303
        %v311 = vadd.f32 %v299, %v308
        %312 = vst [vmem:[%s188] sm:$0xf] %v310
        %313 = vst [vmem:[%s188 + $0x4] sm:$0xf] %v311
        %s314 = sand.u32 %s109, 1
        %s315 = scalar_lea.sflag [#allocation3], %s314
        %s316 = sand.u32 %s109, 1
        %s317 = smul.addr %s316, 8
        %s318 = scalar_lea.vmem [#allocation2], %s317
        // Predicated region
        $region33: #{tpu_custom_call.1} parent=31 // pred_check
          %p319 = pneg %p119
        $region34: #{tpu_custom_call.1} parent=31 // pred_check_branch
          %321 = sbr.rel (%p319) target = $region36
        $region35: #{tpu_custom_call.1} parent=31 // pred_region
          %s322 = smul.u32 2, %s22
          %s324 = ssub.s32 128, 128
          %325 = vsyncadd %s315, %s324
          %s326 = smul.addr %s21, 2
          %s327 = sadd.s32 %s322, %s326
          %s328 = smul.addr %s327, 64
          %s329 = scalar_lea.hbm %s3, %s328
          %s330 = sshll.u32 %s318, 4
          %s331 = int_to_ptr.vmem [resolvable:$true] %s330
          %336 = dma.vmem_to_hbm [thread:$0]  %s331, 128, %s329, %s315, 64, 64, 4
        $region36: #{tpu_custom_call.1} parent=31 // pred_fallthru
          _
      $region32: #{tpu_custom_call.1} parent=5 // pred_fallthru
        _
      %p337 = scmp.le.s32.totalorder 2, %s12
      // Predicated region
      $region37: #{tpu_custom_call.1} parent=5 // pred_check
        %p338 = pneg %p337
      $region38: #{tpu_custom_call.1} parent=5 // pred_check_branch
        %340 = sbr.rel (%p338) target = $region40
      $region39: #{tpu_custom_call.1} parent=5 // pred_region
        %s341 = ssub.s32 %s12, 2
        // Predicated region
        $region41: #{tpu_custom_call.1} parent=39 // pred_check
          %p342 = pneg %p125
        $region42: #{tpu_custom_call.1} parent=39 // pred_check_branch
          %344 = sbr.rel (%p342) target = $region44
        $region43: #{tpu_custom_call.1} parent=39 // pred_region
          %s345 = sand.u32 %s110, 1
          %s346 = scalar_lea.sflag [#allocation3], %s345
          %s347 = sand.u32 %s110, 1
          %s348 = smul.addr %s347, 8
          %s349 = scalar_lea.vmem [#allocation2], %s348
          %350 = dma.done %s346, 128
        $region44: #{tpu_custom_call.1} parent=39 // pred_fallthru
          _
      $region40: #{tpu_custom_call.1} parent=5 // pred_fallthru
        _
    $region6: #{tpu_custom_call.1} parent=1 // loop_footer
      %s16 = sadd.s32 1, %s12
    $region7: #{tpu_custom_call.1} parent=1 // loop_footer_branch
      %11 = sbr.rel target = $region3
    $region8: #{tpu_custom_call.1} parent=1 // loop_exit
      _
    %351 = vsyncpa [#allocation3], 1
    %s352 = scalar_lea.sflag [#allocation3], 1
    %353 = vsyncpa %s352, 1

</llo_original>
